<compile_context>
chip_gen: v7x
topology: tpu7x:2x2x1
jax: 0.10.0
libtpu: 0.0.40
codegen_flags: <defaults>
</compile_context>

<pallas_src>
import functools
import itertools

import jax
import jax.numpy as jnp
from jax.experimental import pallas as pl
from jax.experimental.pallas import tpu as pltpu


# ---------------------------------------------------------------------------
# Pallas kernels
# ---------------------------------------------------------------------------

def _round_up(x, m):
    return (x + m - 1) // m * m


def _mm_kernel(a_ref, b_ref, bias_ref, o_ref, *, act):
    y = jnp.dot(a_ref[...], b_ref[...], preferred_element_type=jnp.float32)
    y = y + bias_ref[...]          # broadcasts from (1, tn) or (tm, 1)
    if act == "relu":
        y = jnp.maximum(y, 0.0)
    elif act == "tanh":
        y = jnp.tanh(y)
    elif act == "sigmoid":
        y = jax.nn.sigmoid(y)
    o_ref[...] = y.astype(o_ref.dtype)


def matmul_bias_act(a, b, bias=None, act=None, bias_is_rows=False):
    """y = act(a @ b + bias), single-K-block Pallas GEMM, bf16 in / f32 acc.

    bias_is_rows=False: bias has length N (per output column).
    bias_is_rows=True : bias has length M (per output row) — used for the
                        transposed conv orientation where rows are channels.
    """
    M, K = a.shape
    K2, N = b.shape
    assert K == K2
    Kp = _round_up(K, 8)
    assert Kp <= 2048, "single-K-block kernel assumes small K"

    # Row tile: rows are either tiny (channels / batch) or huge (not in this
    # model); pad only to a multiple of 8 when small.
    if M <= 512:
        tm = _round_up(M, 8)
        Mp = tm
    else:
        tm = 256
        Mp = _round_up(M, tm)

    # Column tile: full-dim block when small; lane-dense 128-multiple when big.
    if N <= 512:
        tn, Np = N, N
    else:
        Np = _round_up(N, 128)
        tn = next(t for t in (1024, 512, 256, 128) if Np % t == 0)

    a_p = a.astype(jnp.bfloat16)
    if (Mp, Kp) != (M, K):
        a_p = jnp.pad(a_p, ((0, Mp - M), (0, Kp - K)))
    b_p = b.astype(jnp.bfloat16)
    if (Kp, Np) != (K, N):
        b_p = jnp.pad(b_p, ((0, Kp - K), (0, Np - N)))

    if bias is None:
        bias = jnp.zeros((M if bias_is_rows else N,), jnp.float32)
    if bias_is_rows:
        bias_p = jnp.pad(bias.astype(jnp.float32), ((0, Mp - M),)).reshape(Mp, 1)
        bias_spec = pl.BlockSpec((tm, 1), lambda i, j: (i, 0))
    else:
        bias_p = jnp.pad(bias.astype(jnp.float32), ((0, Np - N),)).reshape(1, Np)
        bias_spec = pl.BlockSpec((1, tn), lambda i, j: (0, j))

    grid = (Mp // tm, Np // tn)
    out = pl.pallas_call(
        functools.partial(_mm_kernel, act=act),
        out_shape=jax.ShapeDtypeStruct((Mp, Np), jnp.float32),
        grid_spec=pltpu.PrefetchScalarGridSpec(
            num_scalar_prefetch=0,
            grid=grid,
            in_specs=[
                pl.BlockSpec((tm, Kp), lambda i, j: (i, 0)),
                pl.BlockSpec((Kp, tn), lambda i, j: (0, j)),
                bias_spec,
            ],
            out_specs=pl.BlockSpec((tm, tn), lambda i, j: (i, j)),
        ),
        compiler_params=pltpu.CompilerParams(
            dimension_semantics=("parallel", "parallel")),
    )(a_p, b_p, bias_p)
    if (Mp, Np) != (M, N):
        out = out[:M, :N]
    return out


def _mm_ln_relu_kernel(a_ref, b_ref, g_ref, beta_ref, o_ref):
    y = jnp.dot(a_ref[...], b_ref[...], preferred_element_type=jnp.float32)
    mu = jnp.mean(y, axis=-1, keepdims=True)
    var = jnp.mean((y - mu) ** 2, axis=-1, keepdims=True)
    y = (y - mu) * jax.lax.rsqrt(var + 1e-5)
    y = y * g_ref[...] + beta_ref[...]
    o_ref[...] = jnp.maximum(y, 0.0)


def matmul_ln_relu(a, b, gamma, beta):
    """relu(LayerNorm(a @ b)) fused in one kernel (tiny M, full N in VMEM)."""
    M, K = a.shape
    _, N = b.shape
    Mp = _round_up(M, 8)
    Kp = _round_up(K, 8)
    a_p = jnp.pad(a.astype(jnp.bfloat16), ((0, Mp - M), (0, Kp - K)))
    b_p = jnp.pad(b.astype(jnp.bfloat16), ((0, Kp - K), (0, 0)))
    out = pl.pallas_call(
        _mm_ln_relu_kernel,
        out_shape=jax.ShapeDtypeStruct((Mp, N), jnp.float32),
        in_specs=[pl.BlockSpec(memory_space=pltpu.MemorySpace.VMEM)] * 4,
        out_specs=pl.BlockSpec(memory_space=pltpu.MemorySpace.VMEM),
    )(a_p, b_p,
      gamma.reshape(1, N).astype(jnp.float32),
      beta.reshape(1, N).astype(jnp.float32))
    return out[:M]


# ---------------------------------------------------------------------------
# Conv lowering (transposed-orientation GEMM: channels on rows, spatial on lanes)
# ---------------------------------------------------------------------------

def _im2col2d_T(x, kh, kw, sh, sw):
    B, C, H, W = x.shape
    Ho = (H - kh) // sh + 1
    Wo = (W - kw) // sw + 1
    cols = []
    for i in range(kh):
        for j in range(kw):
            cols.append(x[:, :, i:i + sh * Ho:sh, j:j + sw * Wo:sw])
    p = jnp.stack(cols, axis=2)                       # (B, C, kh*kw, Ho, Wo)
    p = p.transpose(1, 2, 0, 3, 4).reshape(C * kh * kw, B * Ho * Wo)
    return p, Ho, Wo


def conv2d_gemm(x, w, b, stride=(1, 1), act=None):
    # x: (B, C, H, W) already explicitly padded; w: (Cout, Cin, kh, kw)
    B = x.shape[0]
    Cout, Cin, kh, kw = w.shape
    pT, Ho, Wo = _im2col2d_T(x, kh, kw, *stride)
    yT = matmul_bias_act(w.reshape(Cout, -1), pT, b, act=act, bias_is_rows=True)
    return yT.reshape(Cout, B, Ho, Wo).transpose(1, 0, 2, 3)


def _im2col3d_T(x, kd, kh, kw, sd, sh, sw):
    B, C, D, H, W = x.shape
    Do = (D - kd) // sd + 1
    Ho = (H - kh) // sh + 1
    Wo = (W - kw) // sw + 1
    cols = []
    for a in range(kd):
        for i in range(kh):
            for j in range(kw):
                cols.append(x[:, :, a:a + sd * Do:sd,
                              i:i + sh * Ho:sh, j:j + sw * Wo:sw])
    p = jnp.stack(cols, axis=2)                  # (B, C, k3, Do, Ho, Wo)
    p = p.transpose(1, 2, 0, 3, 4, 5).reshape(C * kd * kh * kw, B * Do * Ho * Wo)
    return p, Do, Ho, Wo


def conv3d_gemm(x, w, b, stride=(1, 1, 1), act=None):
    B = x.shape[0]
    Cout, Cin, kd, kh, kw = w.shape
    pT, Do, Ho, Wo = _im2col3d_T(x, kd, kh, kw, *stride)
    yT = matmul_bias_act(w.reshape(Cout, -1), pT, b, act=act, bias_is_rows=True)
    return yT.reshape(Cout, B, Do, Ho, Wo).transpose(1, 0, 2, 3, 4)


# ---------------------------------------------------------------------------
# ConvTranspose lowering via sub-pixel decomposition (no zero dilation)
# ---------------------------------------------------------------------------

def _sp_axis(I, k, s, p, O):
    """Per-axis sub-pixel geometry for ConvTranspose: out[q*s+r] =
    sum_jj x_pad[q+jj] * w[(jmax-jj)*s + r + p]   (tap index clipped to [0,k))."""
    op = O - ((I - 1) * s - 2 * p + k)
    assert 0 <= op < s, (I, k, s, p, O)
    assert p <= k - 1
    jmax = (k - 1 - p) // s
    jmin = -((s - 1 + p) // s)
    J = jmax - jmin + 1
    Q = -(-O // s)                      # ceil(O / s)
    left = jmax
    right = Q + J - 1 - jmax - I
    assert left >= 0 and right >= 0
    return jmax, J, Q, left, right


def _subpixel_weight(w, stride, padding, jmaxs, Js):
    # w: (Cin, Cout, *k) (PyTorch ConvTranspose layout, BN already folded)
    # returns (prod(stride)*Cout, Cin, *J) regular-conv weight, phase-major.
    Cin, Cout = w.shape[:2]
    ks = w.shape[2:]
    nd = len(ks)
    zero = jnp.zeros((Cin, Cout), w.dtype)
    blocks = []
    for r in itertools.product(*[range(s) for s in stride]):
        taps = []
        for jj in itertools.product(*[range(J) for J in Js]):
            t = tuple((jmaxs[a] - jj[a]) * stride[a] + r[a] + padding[a]
                      for a in range(nd))
            ok = all(0 <= t[a] < ks[a] for a in range(nd))
            taps.append(w[(slice(None), slice(None)) + t] if ok else zero)
        wp = jnp.stack(taps, axis=0).reshape(tuple(Js) + (Cin, Cout))
        wp = jnp.moveaxis(wp, (-2, -1), (1, 0))     # (Cout, Cin, *J)
        blocks.append(wp)
    return jnp.concatenate(blocks, axis=0)          # (nphase*Cout, Cin, *J)


def conv_transpose2d_gemm(x, w, b, stride, padding, out_size, act=None):
    # w: (Cin, Cout, kh, kw)
    B, Cin, H, W = x.shape
    Cout = w.shape[1]
    sh, sw = stride
    jmh, Jh, Qh, lh, rh = _sp_axis(H, w.shape[2], sh, padding[0], out_size[0])
    jmw, Jw, Qw, lw, rw = _sp_axis(W, w.shape[3], sw, padding[1], out_size[1])
    xp = jnp.pad(x, ((0, 0), (0, 0), (lh, rh), (lw, rw)))
    wp = _subpixel_weight(w, stride, padding, (jmh, jmw), (Jh, Jw))
    bp = jnp.tile(b, sh * sw)
    y = conv2d_gemm(xp, wp, bp, stride=(1, 1), act=act)   # (B, sh*sw*Cout, Qh, Qw)
    y = y.reshape(B, sh, sw, Cout, Qh, Qw).transpose(0, 3, 4, 1, 5, 2)
    y = y.reshape(B, Cout, Qh * sh, Qw * sw)
    return y[:, :, :out_size[0], :out_size[1]]


def conv_transpose3d_gemm(x, w, b, stride, padding, out_size, act=None):
    # w: (Cin, Cout, kd, kh, kw)
    B, Cin, D, H, W = x.shape
    Cout = w.shape[1]
    sd, sh, sw = stride
    jmd, Jd, Qd, ld, rd = _sp_axis(D, w.shape[2], sd, padding[0], out_size[0])
    jmh, Jh, Qh, lh, rh = _sp_axis(H, w.shape[3], sh, padding[1], out_size[1])
    jmw, Jw, Qw, lw, rw = _sp_axis(W, w.shape[4], sw, padding[2], out_size[2])
    xp = jnp.pad(x, ((0, 0), (0, 0), (ld, rd), (lh, rh), (lw, rw)))
    wp = _subpixel_weight(w, stride, padding, (jmd, jmh, jmw), (Jd, Jh, Jw))
    bp = jnp.tile(b, sd * sh * sw)
    y = conv3d_gemm(xp, wp, bp, stride=(1, 1, 1), act=act)  # (B, nph*Cout, Qd, Qh, Qw)
    y = y.reshape(B, sd, sh, sw, Cout, Qd, Qh, Qw)
    y = y.transpose(0, 4, 5, 1, 6, 2, 7, 3)
    y = y.reshape(B, Cout, Qd * sd, Qh * sh, Qw * sw)
    return y[:, :, :out_size[0], :out_size[1], :out_size[2]]


# ---------------------------------------------------------------------------
# Misc glue
# ---------------------------------------------------------------------------

def maxpool3d_122(x):
    B, C, D, H, W = x.shape
    return x.reshape(B, C, D, H // 2, 2, W // 2, 2).max(axis=(4, 6))


def maxpool_last(x, k):
    if k == 1:
        return x
    lead = x.shape[:-1]
    W = x.shape[-1]
    return x.reshape(*lead, W // k, k).max(axis=-1)


def fold_bn(w, b, gamma, beta, mean, var, out_axis=0, eps=1e-5):
    scale = gamma / jnp.sqrt(var + eps)
    shape = [1] * w.ndim
    shape[out_axis] = -1
    return w * scale.reshape(shape), scale * b + (beta - scale * mean)


# ---------------------------------------------------------------------------
# Parameter construction (mirrors the PyTorch __init__ shape logic)
# ---------------------------------------------------------------------------

def init_params(key, stft_shape, v_shape, alpha):
    keys = iter(jax.random.split(key, 256))

    def rnd(shape, scale=0.1):
        return scale * jax.random.normal(next(keys), shape, jnp.float32)

    def bn_params(c):
        return dict(gamma=1.0 + rnd((c,), 0.05), beta=rnd((c,), 0.05),
                    mean=jnp.zeros((c,), jnp.float32),
                    var=jnp.ones((c,), jnp.float32))

    p = {}

    # ---- audio encoder ----
    time_dim = stft_shape[2]
    n_div = 0
    while time_dim > v_shape[2]:
        time_dim /= 2
        n_div += 1
    audio_enc = []
    in_ch = 2
    H, W = stft_shape[2], stft_shape[3]
    for i in range(alpha):
        out_ch = in_ch * 2
        stride = (2, 2) if i < n_div else (1, 2)
        audio_enc.append(dict(w=rnd((out_ch, in_ch, 5, 5)), b=rnd((out_ch,)),
                              bn=bn_params(out_ch), stride=stride))
        H = (H + 4 - 5) // stride[0] + 1
        W = (W + 4 - 5) // stride[1] + 1
        in_ch = out_ch
    p["audio_enc"] = audio_enc
    a_enc_shape = (stft_shape[0], in_ch, H, W)

    # ---- visual encoder ----
    spatial_dim = v_shape[3]
    visual_enc = []
    in_ch_v = 1
    while spatial_dim > a_enc_shape[-1] // 2:
        out_ch_v = in_ch_v * 2
        visual_enc.append(dict(w=rnd((out_ch_v, in_ch_v, 3, 3, 3)),
                               b=rnd((out_ch_v,)), bn=bn_params(out_ch_v)))
        spatial_dim /= 2
        in_ch_v = out_ch_v
    p["visual_enc"] = visual_enc
    nv = len(visual_enc)
    v_enc_shape = (v_shape[0], in_ch_v, v_shape[2],
                   v_shape[3] // (2 ** nv), v_shape[4] // (2 ** nv))

    # ---- latent pooling ----
    flat = v_enc_shape[3] * v_enc_shape[4]
    if flat > a_enc_shape[-1]:
        divs, pool_v = flat / a_enc_shape[-1], True
    else:
        divs, pool_v = a_enc_shape[-1] / flat, False
    pool_k = int(divs)
    p["pool_v"], p["pool_k"] = pool_v, pool_k
    a_last = a_enc_shape[-1] if pool_v else a_enc_shape[-1] // pool_k
    concat_ch = a_enc_shape[1] + v_enc_shape[1]

    # ---- av_featureNet ----
    featnet = []
    in_f = concat_ch
    out_f = in_f // 2
    while out_f > 1:
        out_f = in_f // 2
        featnet.append(dict(w=rnd((out_f, in_f, 1, 3)), b=rnd((out_f,))))
        in_f = out_f
    p["featnet"] = featnet

    # ---- fc nets ----
    av_feat_dim = a_enc_shape[2] * a_last
    fc_out = 512
    p["fc_w"] = rnd((av_feat_dim, fc_out))
    p["ln_gamma"] = 1.0 + rnd((fc_out,), 0.05)
    p["ln_beta"] = rnd((fc_out,), 0.05)
    a_head = a_enc_shape[1] * a_enc_shape[2] * a_enc_shape[3]
    v_head = v_enc_shape[1] * v_enc_shape[2] * v_enc_shape[3] * v_enc_shape[4]
    p["a_out_w"], p["a_out_b"] = rnd((fc_out, a_head)), rnd((a_head,))
    p["v_out_w"], p["v_out_b"] = rnd((fc_out, v_head)), rnd((v_head,))

    # ---- audio decoder ----
    Ca = a_enc_shape[1]
    p["a_up1"] = dict(w=rnd((Ca, Ca // 2, 5, 5)), b=rnd((Ca // 2,)),
                      bn=bn_params(Ca // 2))
    p["a_up2"] = dict(w=rnd((Ca // 2, Ca // 4, 5, 5)), b=rnd((Ca // 4,)),
                      bn=bn_params(Ca // 4))
    p["a_up3"] = dict(w=rnd((Ca // 4, Ca // 8, 5, 5)), b=rnd((Ca // 8,)),
                      bn=bn_params(Ca // 8))
    p["a_up4"] = dict(w=rnd((Ca // 8, 2, 3, 3)), b=rnd((2,)))

    # ---- video decoder ----
    Cv = v_enc_shape[1]
    p["v_up1"] = dict(w=rnd((Cv, Cv // 2, 3, 3, 3)), b=rnd((Cv // 2,)))
    p["v_up2"] = dict(w=rnd((Cv // 2, Cv // 4, 3, 3, 3)), b=rnd((Cv // 4,)))
    p["v_up3"] = dict(w=rnd((Cv // 4, Cv // 8, 3, 3, 3)), b=rnd((Cv // 8,)))
    p["v_up4"] = dict(w=rnd((Cv // 8, 1, 3, 3, 3)), b=rnd((1,)))
    return p


# ---------------------------------------------------------------------------
# Forward pass (train_ae=False branch of AV_Model_STFT.forward)
# ---------------------------------------------------------------------------

def forward(params, x_a, x_v):
    B = x_a.shape[0]

    # audio encoder: ZeroPad2d((2,2,3,1)) -> Conv2d -> BN -> Tanh
    h = x_a
    for layer in params["audio_enc"]:
        hp = jnp.pad(h, ((0, 0), (0, 0), (3, 1), (2, 2)))
        w, b = fold_bn(layer["w"], layer["b"], **layer["bn"], out_axis=0)
        h = conv2d_gemm(hp, w, b, stride=layer["stride"], act="tanh")
    x_a_enc = h

    # visual encoder: Conv3d(pad=1) -> BN -> ReLU -> MaxPool3d((1,2,2))
    g = x_v
    for layer in params["visual_enc"]:
        gp = jnp.pad(g, ((0, 0), (0, 0), (1, 1), (1, 1), (1, 1)))
        w, b = fold_bn(layer["w"], layer["b"], **layer["bn"], out_axis=0)
        g = conv3d_gemm(gp, w, b, stride=(1, 1, 1), act="relu")
        g = maxpool3d_122(g)
    x_v_enc = g

    # latent fusion
    x_v_flat = x_v_enc.reshape(x_v_enc.shape[0], x_v_enc.shape[1],
                               x_v_enc.shape[2], -1)
    if params["pool_v"]:
        x_v_flat = maxpool_last(x_v_flat, params["pool_k"])
    else:
        x_a_enc = maxpool_last(x_a_enc, params["pool_k"])
    av = jnp.concatenate([x_a_enc, x_v_flat], axis=1)

    # av_featureNet: ZeroPad2d((1,1,0,0)) -> Conv2d(1x3) -> ReLU
    for layer in params["featnet"]:
        avp = jnp.pad(av, ((0, 0), (0, 0), (0, 0), (1, 1)))
        av = conv2d_gemm(avp, layer["w"], layer["b"], stride=(1, 1), act="relu")

    av_features = av[:, 0].reshape(B, -1)            # squeeze(1) + flatten
    # Linear(bias=False) + LayerNorm + ReLU fused into one Pallas kernel
    # (the extra F.relu in the PyTorch forward is a no-op after ReLU).
    av_fc = matmul_ln_relu(av_features, params["fc_w"],
                           params["ln_gamma"], params["ln_beta"])

    # fused output heads: one GEMM, split columns
    a_dim = params["a_out_w"].shape[1]
    head_w = jnp.concatenate([params["a_out_w"], params["v_out_w"]], axis=1)
    head_b = jnp.concatenate([params["a_out_b"], params["v_out_b"]])
    heads = matmul_bias_act(av_fc, head_w, head_b, act="relu")
    x_a_head = heads[:, :a_dim].reshape(x_a_enc.shape)
    x_v_head = heads[:, a_dim:].reshape(x_v_enc.shape)

    # audio decoder: ConvT2d -> BN -> tanh  (x3)  -> ConvT2d
    _, Ca, Ha, Wa = x_a_head.shape
    l = params["a_up1"]
    w, b = fold_bn(l["w"], l["b"], **l["bn"], out_axis=1)
    y = conv_transpose2d_gemm(x_a_head, w, b, (2, 2), (2, 2),
                              (Ha * 2, Wa * 2), act="tanh")
    l = params["a_up2"]
    w, b = fold_bn(l["w"], l["b"], **l["bn"], out_axis=1)
    y = conv_transpose2d_gemm(y, w, b, (2, 2), (2, 2),
                              (Ha * 4, Wa * 4), act="tanh")
    l = params["a_up3"]
    w, b = fold_bn(l["w"], l["b"], **l["bn"], out_axis=1)
    y = conv_transpose2d_gemm(y, w, b, (1, 2), (2, 2),
                              (Ha * 4, Wa * 8), act="tanh")
    l = params["a_up4"]
    x_a_out = conv_transpose2d_gemm(y, l["w"], l["b"], (1, 2), (1, 1),
                                    (Ha * 4, Wa * 16), act=None)

    # video decoder: ConvT3d -> sigmoid  (x4, no BN in this branch of forward)
    _, Cv, Tv, Hv, Wv = x_v_head.shape
    l = params["v_up1"]
    z = conv_transpose3d_gemm(x_v_head, l["w"], l["b"], (1, 4, 4), (1, 1, 1),
                              (Tv, Hv * 4, Wv * 4), act="sigmoid")
    l = params["v_up2"]
    z = conv_transpose3d_gemm(z, l["w"], l["b"], (1, 4, 4), (1, 1, 1),
                              (Tv, Hv * 16, Wv * 16), act="sigmoid")
    l = params["v_up3"]
    z = conv_transpose3d_gemm(z, l["w"], l["b"], (1, 2, 2), (1, 1, 1),
                              (Tv, Hv * 32, Wv * 32), act="sigmoid")
    l = params["v_up4"]
    x_v_out = conv_transpose3d_gemm(z, l["w"], l["b"], (1, 2, 2), (1, 1, 1),
                                    (Tv, Hv * 64, Wv * 64), act="sigmoid")

    return x_a_out, x_v_out


# ---------------------------------------------------------------------------
# Main
# ---------------------------------------------------------------------------

if __name__ == "__main__":
    key = jax.random.PRNGKey(0)
    B = 2
    stft_shape = (B, 2, 16, 32)     # (N, 2, T_audio, F)
    v_shape = (B, 1, 4, 16, 16)     # (N, 1, T_video, H, W)
    alpha = 3

    kp, ka, kv = jax.random.split(key, 3)
    params = init_params(kp, stft_shape, v_shape, alpha)
    x_a = jax.random.uniform(ka, stft_shape, jnp.float32)
    x_v = jax.random.uniform(kv, v_shape, jnp.float32)

    x_a_out, x_v_out = forward(params, x_a, x_v)
    jax.block_until_ready((x_a_out, x_v_out))

    # shapes implied by the module: audio enc (B,16,4,4) -> decoder (B,2,16,64)
    #                                video enc (B,8,4,2,2) -> decoder (B,1,4,128,128)
    assert x_a_out.shape == (B, 2, 16, 64), x_a_out.shape
    assert x_v_out.shape == (B, 1, 4, 128, 128), x_v_out.shape
    assert jnp.all(jnp.isfinite(x_a_out)) and jnp.all(jnp.isfinite(x_v_out))
    print("KERNEL_OK")
</pallas_src>

<mosaic_0001>
module attributes {stable_mosaic.version = 11 : i64} {
  func.func @_mm_kernel(%arg0: i32, %arg1: i32, %arg2: memref<8x56xbf16, #tpu.memory_space<vmem>>, %arg3: memref<56x256xbf16, #tpu.memory_space<vmem>>, %arg4: memref<8x1xf32, #tpu.memory_space<vmem>>, %arg5: memref<8x256xf32, #tpu.memory_space<vmem>>) attributes {dimension_semantics = [#tpu.dimension_semantics<parallel>, #tpu.dimension_semantics<parallel>], iteration_bounds = array<i64: 1, 1>, scalar_prefetch = 0 : i64, scratch_operands = 0 : i64, tpu.core_type = #tpu.core_type<tc>, window_params = [{transform_indices = @transform_0, window_bounds = array<i64: 8, 56>}, {transform_indices = @transform_1, window_bounds = array<i64: 56, 256>}, {transform_indices = @transform_2, window_bounds = array<i64: 8, 1>}, {transform_indices = @transform_3, window_bounds = array<i64: 8, 256>}]} {
    %c0 = arith.constant 0 : index
    %c0_0 = arith.constant 0 : index
    %0 = vector.load %arg2[%c0, %c0_0] : memref<8x56xbf16, #tpu.memory_space<vmem>>, vector<8x56xbf16>
    %c0_1 = arith.constant 0 : index
    %c0_2 = arith.constant 0 : index
    %1 = vector.load %arg3[%c0_1, %c0_2] : memref<56x256xbf16, #tpu.memory_space<vmem>>, vector<56x256xbf16>
    %cst = arith.constant dense<0.000000e+00> : vector<8x256xf32>
    %2 = tpu.matmul %0, %1, %cst {dimension_numbers = #tpu.dot_dimension_numbers<[1], [0], [0], [1], [0, 0, 1, 1], [], []>} : vector<8x56xbf16>, vector<56x256xbf16>, vector<8x256xf32> -> vector<8x256xf32>
    %c0_3 = arith.constant 0 : index
    %c0_4 = arith.constant 0 : index
    %3 = vector.load %arg4[%c0_3, %c0_4] : memref<8x1xf32, #tpu.memory_space<vmem>>, vector<8x1xf32>
    %4 = vector.broadcast %3 : vector<8x1xf32> to vector<8x256xf32>
    %5 = arith.addf %2, %4 : vector<8x256xf32>
    %6 = math.tanh %5 : vector<8x256xf32>
    %c0_5 = arith.constant 0 : index
    %c0_6 = arith.constant 0 : index
    %7 = vector.load %arg5[%c0_5, %c0_6] : memref<8x256xf32, #tpu.memory_space<vmem>>, vector<8x256xf32>
    tpu.vector_store %arg5[%c0_5, %c0_6], %6 {strides = array<i32>} : memref<8x256xf32, #tpu.memory_space<vmem>>, vector<8x256xf32>,
    return
  }
  func.func @transform_0(%arg0: i32, %arg1: i32) -> (i32, i32) {
    %c0_i32 = arith.constant 0 : i32
    %c0_i32_0 = arith.constant 0 : i32
    return %arg0, %c0_i32 : i32, i32
  }
  func.func @transform_1(%arg0: i32, %arg1: i32) -> (i32, i32) {
    %c0_i32 = arith.constant 0 : i32
    %c0_i32_0 = arith.constant 0 : i32
    return %c0_i32, %arg1 : i32, i32
  }
  func.func @transform_2(%arg0: i32, %arg1: i32) -> (i32, i32) {
    %c0_i32 = arith.constant 0 : i32
    %c0_i32_0 = arith.constant 0 : i32
    return %arg0, %c0_i32 : i32, i32
  }
  func.func @transform_3(%arg0: i32, %arg1: i32) -> (i32, i32) {
    %c0_i32 = arith.constant 0 : i32
    return %arg0, %arg1 : i32, i32
  }
}

</mosaic_0001>

<llo_original>
// kernel: tpu_custom_call.1
$region0: #{tpu_custom_call.1}
  #allocation0 [shape = 'u32[]', space=smem, size = 0x4, offset = 0x4, fixed_abs, tag = 'smem constant byte address 0x4 - core index']
  #allocation1 [shape = 'u32[144,128]{1,0:T(1,128)}', space=vmem, size = 0x12000, scoped, tag = 'internal scratch']
  %s0 = inlined_call_operand.vmem [shape: bf16[8,56], index: 0, kind: input, shape index: {}]
  %s1 = inlined_call_operand.hbm [shape: bf16[56,256], index: 1, kind: input, shape index: {}]
  %s2 = inlined_call_operand.vmem [shape: f32[8,1], index: 2, kind: input, shape index: {}]
  %s3 = inlined_call_operand.hbm [shape: f32[8,256], index: 3, kind: output, shape index: {}]
  %s4 = sld [smem:[#allocation0]]
  $region26: #{tpu_custom_call.1} parent=0
    _
  %s6 = ssub.s32 1, %s4
  %s7 = scalar_select 0, %s6, %s4
  $region1: #{tpu_custom_call.1} parent=0
    #allocation2 [shape = 'u8[28672]{0}', space=vmem, size = 0x7000, scoped, tag = 'input window, operand 1, single buffered']
    #allocation3 [shape = 's32[1]{0}', space=sflag, size = 0x4, scoped, tag = 'scoped memory for tpu_custom_call.1']
    #allocation4 [shape = 's32[1]{0}', space=sflag, size = 0x4, scoped, tag = 'scoped memory for tpu_custom_call.1']
    #allocation5 [shape = 'u8[8192]{0}', space=vmem, size = 0x2000, scoped, tag = 'output window, operand 0, single buffered']
    %8 = vsyncpa [#allocation3], 0
    %9 = vsyncpa [#allocation4], 0
    // Predicated region
    $region2: #{tpu_custom_call.1} parent=1 // pred_check
      _
    $region3: #{tpu_custom_call.1} parent=1 // pred_check_branch
      %11 = sbr.rel (0) target = $region5
    $region4: #{tpu_custom_call.1} parent=1 // pred_region
      _
    $region5: #{tpu_custom_call.1} parent=1 // pred_fallthru
      _
    // Predicated region
    $region6: #{tpu_custom_call.1} parent=1 // pred_check
      _
    $region7: #{tpu_custom_call.1} parent=1 // pred_check_branch
      %13 = sbr.rel (0) target = $region9
    $region8: #{tpu_custom_call.1} parent=1 // pred_region
      %s15 = ssub.s32 896, 896
      %16 = vsyncadd [#allocation3], %s15
      %s17 = sshll.u32 [#allocation2], 4
      %s18 = int_to_ptr.vmem [resolvable:$true] %s17
      %23 = dma.hbm_to_vmem [thread:$0]  %s1, 896, %s18, [#allocation3], 128, 128, 8
    $region9: #{tpu_custom_call.1} parent=1 // pred_fallthru
      _
    // Predicated region
    $region10: #{tpu_custom_call.1} parent=1 // pred_check
      _
    $region11: #{tpu_custom_call.1} parent=1 // pred_check_branch
      %25 = sbr.rel (0) target = $region13
    $region12: #{tpu_custom_call.1} parent=1 // pred_region
      _
    $region13: #{tpu_custom_call.1} parent=1 // pred_fallthru
      _
    // Predicated region
    $region14: #{tpu_custom_call.1} parent=1 // pred_check
      _
    $region15: #{tpu_custom_call.1} parent=1 // pred_check_branch
      %27 = sbr.rel (0) target = $region17
    $region16: #{tpu_custom_call.1} parent=1 // pred_region
      %28 = dma.done [#allocation3], 896
    $region17: #{tpu_custom_call.1} parent=1 // pred_fallthru
      _
    %v30 = vld [vmem:[%s0] sm:$0xf]
    %v31 = vld [vmem:[#allocation2] sm:$0xff]
    %v32 = vld [vmem:[#allocation2 + $0x8] sm:$0xff]
    %v33 = vld [vmem:[#allocation2 + $0x10] sm:$0xff]
    %v34 = vld [vmem:[#allocation2 + $0x18] sm:$0xff]
    %v35 = vld [vmem:[#allocation2 + $0x20] sm:$0xff]
    %v36 = vld [vmem:[#allocation2 + $0x28] sm:$0xff]
    %v37 = vld [vmem:[#allocation2 + $0x30] sm:$0xff]
    %v38 = vld [vmem:[%s2] sm:$0xff]
    %40 = vset.pattern.permute.xlu0 0
    %41 = vperm.xlu0 %40, %v38
    %v42 = vpop.permute.xlu0 %41
    %v51 = vunpack.c.l.b16 %v31
    %v52 = vunpack.c.h.b16 %v31
    %v53 = vunpack.c.l.b16 %v32
    %v54 = vunpack.c.h.b16 %v32
    %v55 = vunpack.c.l.b16 %v33
    %v56 = vunpack.c.h.b16 %v33
    %v57 = vunpack.c.l.b16 %v34
    %v58 = vunpack.c.h.b16 %v34
    %v59 = vunpack.c.l.b16 %v35
    %v60 = vunpack.c.h.b16 %v35
    %v61 = vunpack.c.l.b16 %v36
    %v62 = vunpack.c.h.b16 %v36
    %v63 = vunpack.c.l.b16 %v37
    %v64 = vunpack.c.h.b16 %v37
    %v65 = vpack.c.b16 %v53, %v51
    %v66 = vpack.c.b16 %v54, %v52
    %v67 = vpack.c.b16 %v57, %v55
    %v68 = vpack.c.b16 %v58, %v56
    %v69 = vpack.c.b16 %v61, %v59
    %v70 = vpack.c.b16 %v62, %v60
    %v71 = vpack.c.b16 %v63, %v63
    %v72 = vpack.c.b16 %v64, %v64
    %vm79 = vcmask 457728
    %v81 = vsel %vm79, %v30, 0
    %vm83 = vcmask 1043456
    %v85 = vsel %vm83, %v71, 0
    %v88 = vsel %vm83, %v72, 0
    %90 = vmatprep.subr.bf16.mxu0 %v66
    %91 = vmatpush1.bf16.msra.mxu0 %v65
    %92 = vmatprep.subr.bf16.mxu0 %v68
    %93 = vmatpush1.bf16.msra.mxu0 %v67
    %94 = vmatprep.subr.bf16.mxu0 %v70
    %95 = vmatpush1.bf16.msra.mxu0 %v69
    %96 = vmatprep.subr.bf16.mxu0 %v88
    %97 = vmatpush1.bf16.msra.mxu0 %v85
    %98 = vmatprep.subr.bf16.mxu0 0
    %99 = vmatpush1.bf16.msra.mxu0 0
    %100 = vmatprep.subr.bf16.mxu0 0
    %101 = vmatpush1.bf16.msra.mxu0 0
    %102 = vmatprep.subr.bf16.mxu0 0
    %103 = vmatpush1.bf16.msra.mxu0 0
    %104 = vmatprep.subr.bf16.mxu0 0
    %105 = vmatpush1.bf16.msra.mxu0 0
    %106 = vmatprep.subr.bf16.mxu0 0
    %107 = vmatpush1.bf16.msra.mxu0 0
    %108 = vmatprep.subr.bf16.mxu0 0
    %109 = vmatpush1.bf16.msra.mxu0 0
    %110 = vmatprep.subr.bf16.mxu0 0
    %111 = vmatpush1.bf16.msra.mxu0 0
    %112 = vmatprep.subr.bf16.mxu0 0
    %113 = vmatpush1.bf16.msra.mxu0 0
    %114 = vmatprep.subr.bf16.mxu0 0
    %115 = vmatpush1.bf16.msra.mxu0 0
    %116 = vmatprep.subr.bf16.mxu0 0
    %117 = vmatpush1.bf16.msra.mxu0 0
    %118 = vmatprep.subr.bf16.mxu0 0
    %119 = vmatpush1.bf16.msra.mxu0 0
    %120 = vmatprep.subr.bf16.mxu0 0
    %121 = vmatpush1.bf16.msra.mxu0 0
    %122 = vmatprep.mubr.bf16.mxu0 0
    %123 = vmatmul.mubr.bf16.gmra.mrb[0].mxu0 %v81
    %v124 = vpop.f32.mrb[0].mxu0
    %v125 = vadd.f32 %v42, %v124
    %v126 = vpop.f32.mrb[0].mxu0
    %v127 = vadd.f32 %v42, %v126
    %v128 = vpop.f32.mrb[0].mxu0
    %v129 = vpop.f32.mrb[0].mxu0
    %130 = vdwg.mxu0
    %v131 = vtanh.pop %v125
    %v132 = vtanh.pop %v127
    %133 = vst [vmem:[#allocation5] sm:$0xff] %v131
    %134 = vst [vmem:[#allocation5 + $0x8] sm:$0xff] %v132
    // Predicated region
    $region18: #{tpu_custom_call.1} parent=1 // pred_check
      _
    $region19: #{tpu_custom_call.1} parent=1 // pred_check_branch
      %136 = sbr.rel (0) target = $region21
    $region20: #{tpu_custom_call.1} parent=1 // pred_region
      %s138 = ssub.s32 256, 256
      %139 = vsyncadd [#allocation4], %s138
      %s141 = sshll.u32 [#allocation5], 4
      %s142 = int_to_ptr.vmem [resolvable:$true] %s141
      %144 = dma.vmem_to_hbm [thread:$0]  %s142, 256, %s3, [#allocation4]
    $region21: #{tpu_custom_call.1} parent=1 // pred_fallthru
      _
    // Predicated region
    $region22: #{tpu_custom_call.1} parent=1 // pred_check
      _
    $region23: #{tpu_custom_call.1} parent=1 // pred_check_branch
      %146 = sbr.rel (0) target = $region25
    $region24: #{tpu_custom_call.1} parent=1 // pred_region
      %147 = dma.done [#allocation4], 256
    $region25: #{tpu_custom_call.1} parent=1 // pred_fallthru
      _
    %148 = vsyncpa [#allocation3], 1
    %149 = vsyncpa [#allocation4], 1

</llo_original>
